<compile_context>
chip_gen: v7x
topology: tpu7x:2x2x1
jax: 0.10.0
libtpu: 0.0.40
codegen_flags: <defaults>
</compile_context>

<pallas_src>
import math

import jax
import jax.numpy as jnp
from jax.experimental import pallas as pl
from jax.experimental.pallas import tpu as pltpu


def _add_row_kernel(row_ref, val_ref, out_ref):
    # row_ref: VMEM (1, W)     -- grid-invariant broadcast slab (resident, DMA'd once)
    # val_ref: VMEM (ROWS, W)  -- lane-dense tile of the flattened activations
    # out_ref: VMEM (ROWS, W)
    out_ref[...] = val_ref[...] + row_ref[...]   # one vld + one vadd + one vst per vreg


def modality_embedding_forward(val, table, modality_idx,
                               *, target_tile_bytes=2 * 1024 * 1024):
    """val: (B, S, D); table: (num_modality, D); modality_idx: static Python int."""
    B, S, D = val.shape
    num_modality = table.shape[0]
    assert 0 <= int(modality_idx) < num_modality, "modality index out of range"

    dtype = val.dtype
    n_tokens = B * S

    # Static gather of the single embedding row (the module's index is a fixed int).
    row = table[int(modality_idx)].astype(dtype)                 # (D,)

    # Lane-dense repack: put k embedding periods on one row so the last dim is a
    # multiple of 128 lanes (unmasked stores).  Fall back to (n_tokens, D) if the
    # token count doesn't split evenly (last dim then equals the full array dim).
    if D % 128 == 0:
        k = 1
    else:
        k = (D * 128 // math.gcd(D, 128)) // D                   # lcm(D, 128) / D
        if n_tokens % k != 0:
            k = 1
    W = D * k
    n_rows = (n_tokens * D) // W

    val2 = val.reshape(n_rows, W)                                # contiguous -> free
    row_slab = jnp.tile(row, k).reshape(1, W)                    # (1, W), built once

    # Row-tile size: ~2 MiB per tile so 2 in-bufs + 2 out-bufs stay well inside the
    # default scoped-VMEM budget on every generation (v5e 16 MiB, v6e/v7x 32 MiB),
    # while amortizing the ~0.35 us per-grid-step overhead.
    bytes_per_row = W * jnp.dtype(dtype).itemsize
    rows_target = max(8, (target_tile_bytes // bytes_per_row) // 8 * 8)
    if n_rows >= 8:
        rows_block = int(min((n_rows // 8) * 8, rows_target))
    else:
        rows_block = n_rows                                      # full extent (small case)
    grid = (pl.cdiv(n_rows, rows_block),)

    out2 = pl.pallas_call(
        _add_row_kernel,
        out_shape=jax.ShapeDtypeStruct((n_rows, W), dtype),
        grid=grid,
        in_specs=[
            pl.BlockSpec((1, W), lambda i: (0, 0)),              # constant block -> DMA'd once
            pl.BlockSpec((rows_block, W), lambda i: (i, 0)),
        ],
        out_specs=pl.BlockSpec((rows_block, W), lambda i: (i, 0)),
        compiler_params=pltpu.CompilerParams(
            dimension_semantics=("parallel",),                   # shard rows across TCs (v7x)
        ),
    )(row_slab, val2)

    return out2.reshape(B, S, D)


if __name__ == "__main__":
    # Small shapes consistent with the module's forward: val is (B, S, d_model).
    B, S, D = 2, 8, 32
    num_modality = 5
    modality_col_idx = 3  # the integer self.modality = modality[col]

    key = jax.random.PRNGKey(0)
    k_val, k_tab = jax.random.split(key)
    val = jax.random.normal(k_val, (B, S, D), dtype=jnp.float32)
    # Deterministic "Embedding" weight init (synthetic, no checkpoint load).
    table = jax.random.normal(k_tab, (num_modality, D), dtype=jnp.float32)

    out = modality_embedding_forward(val, table, modality_col_idx)
    out = jax.block_until_ready(out)

    # Reference: val + table[modality] broadcast over (B, S).
    ref = val + table[modality_col_idx][None, None, :]
    assert out.shape == (B, S, D)
    assert jnp.allclose(out, ref, atol=1e-6), "mismatch vs reference"

    print("KERNEL_OK")
</pallas_src>

<mosaic_0001>
module attributes {stable_mosaic.version = 11 : i64} {
  func.func @_add_row_kernel(%arg0: i32, %arg1: memref<1x128xf32, #tpu.memory_space<vmem>>, %arg2: memref<4x128xf32, #tpu.memory_space<vmem>>, %arg3: memref<4x128xf32, #tpu.memory_space<vmem>>) attributes {dimension_semantics = [#tpu.dimension_semantics<parallel>], iteration_bounds = array<i64: 1>, scalar_prefetch = 0 : i64, scratch_operands = 0 : i64, tpu.core_type = #tpu.core_type<tc>, window_params = [{pipeline_mode = #tpu.pipeline_mode<synchronous>, transform_indices = @transform_0, window_bounds = array<i64: 1, 128>}, {transform_indices = @transform_1, window_bounds = array<i64: 4, 128>}, {transform_indices = @transform_2, window_bounds = array<i64: 4, 128>}]} {
    %c0 = arith.constant 0 : index
    %c0_0 = arith.constant 0 : index
    %0 = vector.load %arg2[%c0, %c0_0] : memref<4x128xf32, #tpu.memory_space<vmem>>, vector<4x128xf32>
    %c0_1 = arith.constant 0 : index
    %c0_2 = arith.constant 0 : index
    %1 = vector.load %arg1[%c0_1, %c0_2] : memref<1x128xf32, #tpu.memory_space<vmem>>, vector<1x128xf32>
    %2 = vector.broadcast %1 : vector<1x128xf32> to vector<4x128xf32>
    %3 = arith.addf %0, %2 : vector<4x128xf32>
    %c0_3 = arith.constant 0 : index
    %c0_4 = arith.constant 0 : index
    %4 = vector.load %arg3[%c0_3, %c0_4] : memref<4x128xf32, #tpu.memory_space<vmem>>, vector<4x128xf32>
    tpu.vector_store %arg3[%c0_3, %c0_4], %3 {strides = array<i32>} : memref<4x128xf32, #tpu.memory_space<vmem>>, vector<4x128xf32>,
    return
  }
  func.func @transform_0(%arg0: i32) -> (i32, i32) {
    %c0_i32 = arith.constant 0 : i32
    %c0_i32_0 = arith.constant 0 : i32
    %c0_i32_1 = arith.constant 0 : i32
    return %c0_i32, %c0_i32_0 : i32, i32
  }
  func.func @transform_1(%arg0: i32) -> (i32, i32) {
    %c0_i32 = arith.constant 0 : i32
    %c0_i32_0 = arith.constant 0 : i32
    return %arg0, %c0_i32 : i32, i32
  }
  func.func @transform_2(%arg0: i32) -> (i32, i32) {
    %c0_i32 = arith.constant 0 : i32
    %c0_i32_0 = arith.constant 0 : i32
    return %arg0, %c0_i32 : i32, i32
  }
}

</mosaic_0001>

<llo_original>
// kernel: tpu_custom_call.1
$region0: #{tpu_custom_call.1}
  #allocation0 [shape = 'u32[]', space=smem, size = 0x4, offset = 0x4, fixed_abs, tag = 'smem constant byte address 0x4 - core index']
  #allocation1 [shape = 'u32[144,128]{1,0:T(1,128)}', space=vmem, size = 0x12000, scoped, tag = 'internal scratch']
  %s0 = inlined_call_operand.hbm [shape: f32[1,128], index: 0, kind: input, shape index: {}]
  %s1 = inlined_call_operand.hbm [shape: f32[4,128], index: 1, kind: input, shape index: {}]
  %s2 = inlined_call_operand.hbm [shape: f32[4,128], index: 2, kind: output, shape index: {}]
  %s3 = sld [smem:[#allocation0]]
  $region26: #{tpu_custom_call.1} parent=0
    _
  %s5 = ssub.s32 1, %s3
  %s6 = scalar_select 0, %s5, %s3
  $region1: #{tpu_custom_call.1} parent=0
    #allocation2 [shape = 'u8[512]{0}', space=vmem, size = 0x400, scoped, tag = 'input window, operand 0, single buffered']
    #allocation3 [shape = 's32[1]{0}', space=sflag, size = 0x4, scoped, tag = 'scoped memory for tpu_custom_call.1']
    #allocation4 [shape = 's32[1]{0}', space=sflag, size = 0x4, scoped, tag = 'scoped memory for tpu_custom_call.1']
    #allocation5 [shape = 'u8[2048]{0}', space=vmem, size = 0x800, scoped, tag = 'input window, operand 1, single buffered']
    #allocation6 [shape = 's32[1]{0}', space=sflag, size = 0x4, scoped, tag = 'scoped memory for tpu_custom_call.1']
    #allocation7 [shape = 'u8[2048]{0}', space=vmem, size = 0x800, scoped, tag = 'output window, operand 0, single buffered']
    %7 = vsyncpa [#allocation3], 0
    %8 = vsyncpa [#allocation6], 0
    %9 = vsyncpa [#allocation4], 0
    // Predicated region
    $region2: #{tpu_custom_call.1} parent=1 // pred_check
      _
    $region3: #{tpu_custom_call.1} parent=1 // pred_check_branch
      %11 = sbr.rel (0) target = $region5
    $region4: #{tpu_custom_call.1} parent=1 // pred_region
      %s13 = ssub.s32 16, 16
      %14 = vsyncadd [#allocation3], %s13
      %s16 = sshll.u32 [#allocation2], 4
      %s17 = int_to_ptr.vmem [resolvable:$true] %s16
      %19 = dma.hbm_to_vmem [thread:$0]  %s0, 16, %s17, [#allocation3]
    $region5: #{tpu_custom_call.1} parent=1 // pred_fallthru
      _
    // Predicated region
    $region6: #{tpu_custom_call.1} parent=1 // pred_check
      _
    $region7: #{tpu_custom_call.1} parent=1 // pred_check_branch
      %21 = sbr.rel (0) target = $region9
    $region8: #{tpu_custom_call.1} parent=1 // pred_region
      %s23 = ssub.s32 64, 64
      %24 = vsyncadd [#allocation6], %s23
      %s26 = sshll.u32 [#allocation5], 4
      %s27 = int_to_ptr.vmem [resolvable:$true] %s26
      %29 = dma.hbm_to_vmem [thread:$0]  %s1, 64, %s27, [#allocation6]
    $region9: #{tpu_custom_call.1} parent=1 // pred_fallthru
      _
    // Predicated region
    $region10: #{tpu_custom_call.1} parent=1 // pred_check
      _
    $region11: #{tpu_custom_call.1} parent=1 // pred_check_branch
      %31 = sbr.rel (0) target = $region13
    $region12: #{tpu_custom_call.1} parent=1 // pred_region
      %32 = dma.done [#allocation3], 16
    $region13: #{tpu_custom_call.1} parent=1 // pred_fallthru
      _
    // Predicated region
    $region14: #{tpu_custom_call.1} parent=1 // pred_check
      _
    $region15: #{tpu_custom_call.1} parent=1 // pred_check_branch
      %34 = sbr.rel (0) target = $region17
    $region16: #{tpu_custom_call.1} parent=1 // pred_region
      %35 = dma.done [#allocation6], 64
    $region17: #{tpu_custom_call.1} parent=1 // pred_fallthru
      _
    %v36 = vld [vmem:[#allocation5] sm:$0xf]
    %v37 = vld [vmem:[#allocation2] sm:$0x1]
    %v39 = vlaneseq
    %v40 = vshrl.u32 %v39, 7
    %v41 = vsub.s32 0, %v40
    %v42 = vrot.slane %v37, %v41
    %v44 = vadd.f32 %v36, %v42
    %45 = vst [vmem:[#allocation7] sm:$0xf] %v44
    // Predicated region
    $region18: #{tpu_custom_call.1} parent=1 // pred_check
      _
    $region19: #{tpu_custom_call.1} parent=1 // pred_check_branch
      %47 = sbr.rel (0) target = $region21
    $region20: #{tpu_custom_call.1} parent=1 // pred_region
      %s49 = ssub.s32 64, 64
      %50 = vsyncadd [#allocation4], %s49
      %s52 = sshll.u32 [#allocation7], 4
      %s53 = int_to_ptr.vmem [resolvable:$true] %s52
      %55 = dma.vmem_to_hbm [thread:$0]  %s53, 64, %s2, [#allocation4]
    $region21: #{tpu_custom_call.1} parent=1 // pred_fallthru
      _
    // Predicated region
    $region22: #{tpu_custom_call.1} parent=1 // pred_check
      _
    $region23: #{tpu_custom_call.1} parent=1 // pred_check_branch
      %57 = sbr.rel (0) target = $region25
    $region24: #{tpu_custom_call.1} parent=1 // pred_region
      %58 = dma.done [#allocation4], 64
    $region25: #{tpu_custom_call.1} parent=1 // pred_fallthru
      _
    %59 = vsyncpa [#allocation3], 1
    %60 = vsyncpa [#allocation6], 1
    %61 = vsyncpa [#allocation4], 1

</llo_original>
